<compile_context>
chip_gen: v5e
topology: v5e:2x2
jax: 0.10.0
libtpu: 0.0.40
codegen_flags: <defaults>
</compile_context>

<pallas_src>
import functools

import jax
import jax.numpy as jnp
import numpy as np
from jax.experimental import pallas as pl
from jax.experimental.pallas import tpu as pltpu

EPS = 1e-5
NEG_SLOPE = 0.2


def _round_up(n, m=128):
    return ((n + m - 1) // m) * m


# ---------------------------------------------------------------------------
# fused kernel
# ---------------------------------------------------------------------------

def _bn_affine(h, gamma, beta):
    """Training-mode BN (batch mean, biased variance) folded into scale/FMA.

    Two-pass variance (mean first, then mean of squared deviations) to avoid
    catastrophic cancellation when |mean| >> std.
    """
    m = jnp.mean(h, axis=0, keepdims=True)
    d = h - m
    var = jnp.mean(d * d, axis=0, keepdims=True)
    scale = gamma * jax.lax.rsqrt(var + EPS)
    return d * scale + beta


def _bn_leaky(h, gamma, beta):
    h = _bn_affine(h, gamma, beta)
    return jnp.maximum(h, NEG_SLOPE * h)   # LeakyReLU(0.2), slope < 1


def _fused_decoder_kernel(dims, x_ref, w_ref, p_ref, o_ref):
    idp, h2p, hp, rp, ap = dims
    K1 = 2 * idp           # layer-1 K  (rna | atac inputs)
    N1 = 2 * h2p           # layer-1 N
    N2 = 2 * hp            # layer-2 N
    N3 = rp + ap           # layer-3 N

    # ---- small-parameter slab (static, lane-aligned offsets) ----
    o0 = 0
    g1 = p_ref[:, o0:o0 + N1]; o0 += N1
    b1 = p_ref[:, o0:o0 + N1]; o0 += N1
    g2 = p_ref[:, o0:o0 + N2]; o0 += N2
    b2 = p_ref[:, o0:o0 + N2]; o0 += N2
    g3 = p_ref[:, o0:o0 + rp]; o0 += rp       # final RNA BN gamma
    be3 = p_ref[:, o0:o0 + rp]; o0 += rp      # final RNA BN beta
    ab3 = p_ref[:, o0:o0 + ap]; o0 += ap      # surviving ATAC layer-3 bias

    # ---- stacked weight slab (static, sublane/lane-aligned row/col slices) ----
    r0 = 0
    w1 = w_ref[r0:r0 + K1, :N1]; r0 += K1     # block-diag [rna_w1 | 0 ; 0 | atac_w1]
    w2 = w_ref[r0:r0 + N1, :N2]; r0 += N1
    w3 = w_ref[r0:r0 + N2, :N3]; r0 += N2

    # ---- residual add: [rc | ac] + [rr | ar] -> concatenated embedding ----
    x = x_ref[:, :K1] + x_ref[:, K1:]

    # ---- fused dual-branch decoder: 3 matmuls, 2 fused BN+LeakyReLU ----
    h = jnp.dot(x, w1, preferred_element_type=jnp.float32)
    h = _bn_leaky(h, g1, b1)
    h = jnp.dot(h, w2, preferred_element_type=jnp.float32)
    h = _bn_leaky(h, g2, b2)
    h = jnp.dot(h, w3, preferred_element_type=jnp.float32)

    # final step differs per branch: BN on RNA lanes, bias-add on ATAC lanes.
    o_ref[:, :rp] = _bn_affine(h[:, :rp], g3, be3)
    o_ref[:, rp:] = h[:, rp:] + ab3


# ---------------------------------------------------------------------------
# parameter packing (done once, outside the per-call path)
# ---------------------------------------------------------------------------

def pack_bn_concat_decoder_params(rna_params, atac_params,
                                  input_dim, hidden_dim,
                                  rna_output_size, atac_output_size):
    h2 = hidden_dim // 2
    idp = _round_up(input_dim)
    h2p = _round_up(h2)
    hp = _round_up(hidden_dim)
    rp = _round_up(rna_output_size)
    ap = _round_up(atac_output_size)

    def pad2(w, rows, cols):
        return jnp.pad(w, ((0, rows - w.shape[0]), (0, cols - w.shape[1])))

    def block_diag(wa, wb, ra, ca, rb, cb):
        top = jnp.concatenate(
            [pad2(wa, ra, ca), jnp.zeros((ra, cb), jnp.float32)], axis=1)
        bot = jnp.concatenate(
            [jnp.zeros((rb, ca), jnp.float32), pad2(wb, rb, cb)], axis=1)
        return jnp.concatenate([top, bot], axis=0)

    # block-diagonal per-layer weights (RNA block top-left, ATAC bottom-right)
    w1 = block_diag(rna_params["w1"], atac_params["w1"], idp, h2p, idp, h2p)
    w2 = block_diag(rna_params["w2"], atac_params["w2"], h2p, hp, h2p, hp)
    w3 = block_diag(rna_params["w3"], atac_params["w3"], hp, rp, hp, ap)

    # stack all three layers into one sublane-concatenated slab
    wmax = max(w1.shape[1], w2.shape[1], w3.shape[1])

    def padw(w):
        return jnp.pad(w, ((0, 0), (0, wmax - w.shape[1])))

    wslab = jnp.concatenate([padw(w1), padw(w2), padw(w3)], axis=0)

    def pad_row(v, cols):
        v = v.reshape(1, -1)
        return jnp.pad(v, ((0, 0), (0, cols - v.shape[1])))

    # single small-parameter slab, lane-concatenated to match the merged
    # feature layout.  b1/b2 (and rna b3) are dropped: batch-stat BN cancels
    # any per-feature constant added before it (training mode only).
    small = jnp.concatenate([
        pad_row(rna_params["g1"], h2p), pad_row(atac_params["g1"], h2p),
        pad_row(rna_params["be1"], h2p), pad_row(atac_params["be1"], h2p),
        pad_row(rna_params["g2"], hp), pad_row(atac_params["g2"], hp),
        pad_row(rna_params["be2"], hp), pad_row(atac_params["be2"], hp),
        pad_row(rna_params["g3"], rp),
        pad_row(rna_params["be3"], rp),
        pad_row(atac_params["b3"], ap),
    ], axis=1)

    return {
        "wslab": wslab, "small": small,
        "dims": (idp, h2p, hp, rp, ap, rna_output_size, atac_output_size),
    }


# ---------------------------------------------------------------------------
# forward wrapper
# ---------------------------------------------------------------------------

def bn_concat_decoder_forward(rna_common, atac_common, rna_resid, atac_resid,
                              packed):
    B = rna_common.shape[0]
    idp, h2p, hp, rp, ap, rna_out, atac_out = packed["dims"]

    def padx(x):
        return jnp.pad(x, ((0, 0), (0, idp - x.shape[1])))

    # one lane-dense activation slab: [rc | ac | rr | ar]  ->  [B, 4*idp]
    x = jnp.concatenate(
        [padx(rna_common), padx(atac_common), padx(rna_resid), padx(atac_resid)],
        axis=1)

    vmem = pl.BlockSpec(memory_space=pltpu.MemorySpace.VMEM)
    out = pl.pallas_call(
        functools.partial(_fused_decoder_kernel, (idp, h2p, hp, rp, ap)),
        out_shape=jax.ShapeDtypeStruct((B, rp + ap), jnp.float32),
        in_specs=[vmem, vmem, vmem],
        out_specs=vmem,
    )(x, packed["wslab"], packed["small"])

    return out[:, :rna_out], out[:, rp:rp + atac_out]


# ---------------- parameter init (deterministic, PyTorch-default-like) ----------------

def _init_linear(key, fan_in, fan_out):
    kw, kb = jax.random.split(key)
    bound = 1.0 / np.sqrt(fan_in)
    w = jax.random.uniform(kw, (fan_in, fan_out), jnp.float32, -bound, bound)
    b = jax.random.uniform(kb, (1, fan_out), jnp.float32, -bound, bound)
    return w, b


def _init_decoder_params(key, input_dim, hidden_dim, output_size, final_bn):
    h2 = hidden_dim // 2
    k1, k2, k3 = jax.random.split(key, 3)
    w1, b1 = _init_linear(k1, input_dim, h2)
    w2, b2 = _init_linear(k2, h2, hidden_dim)
    w3, b3 = _init_linear(k3, hidden_dim, output_size)
    params = {
        "w1": w1, "b1": b1,
        "g1": jnp.ones((1, h2), jnp.float32), "be1": jnp.zeros((1, h2), jnp.float32),
        "w2": w2, "b2": b2,
        "g2": jnp.ones((1, hidden_dim), jnp.float32), "be2": jnp.zeros((1, hidden_dim), jnp.float32),
        "w3": w3, "b3": b3,
    }
    if final_bn:
        params["g3"] = jnp.ones((1, output_size), jnp.float32)
        params["be3"] = jnp.zeros((1, output_size), jnp.float32)
    return params


# ---------------- plain-JAX reference (full PyTorch formulation, with biases) ----------------

def _ref_bn(h, gamma, beta):
    mean = jnp.mean(h, axis=0, keepdims=True)
    var = jnp.mean((h - mean) ** 2, axis=0, keepdims=True)
    return (h - mean) * jax.lax.rsqrt(var + EPS) * gamma + beta


def _ref_leaky(h):
    return jnp.where(h > 0, h, NEG_SLOPE * h)


def _ref_decoder(common, resid, p, final_bn):
    x = common + resid
    h = x @ p["w1"] + p["b1"]
    h = _ref_leaky(_ref_bn(h, p["g1"], p["be1"]))
    h = h @ p["w2"] + p["b2"]
    h = _ref_leaky(_ref_bn(h, p["g2"], p["be2"]))
    h = h @ p["w3"] + p["b3"]
    if final_bn:
        h = _ref_bn(h, p["g3"], p["be3"])
    return h


if __name__ == "__main__":
    B = 8
    input_dim = 32
    hidden_dim = 64
    rna_output_size = 40
    atac_output_size = 48

    key = jax.random.PRNGKey(0)
    k_in, k_rna, k_atac = jax.random.split(key, 3)
    k1, k2, k3, k4 = jax.random.split(k_in, 4)

    rna_common = jax.random.normal(k1, (B, input_dim), jnp.float32)
    atac_common = jax.random.normal(k2, (B, input_dim), jnp.float32)
    rna_resid = jax.random.normal(k3, (B, input_dim), jnp.float32)
    atac_resid = jax.random.normal(k4, (B, input_dim), jnp.float32)

    rna_params = _init_decoder_params(k_rna, input_dim, hidden_dim, rna_output_size, final_bn=True)
    atac_params = _init_decoder_params(k_atac, input_dim, hidden_dim, atac_output_size, final_bn=False)

    packed = pack_bn_concat_decoder_params(
        rna_params, atac_params, input_dim, hidden_dim, rna_output_size, atac_output_size)

    rna_out, atac_out = bn_concat_decoder_forward(
        rna_common, atac_common, rna_resid, atac_resid, packed)
    jax.block_until_ready((rna_out, atac_out))

    # sanity check against the full plain-JAX reference (biases included) —
    # the kernel's bias-elision / block-diag merge are exact identities in
    # training-mode BatchNorm.
    rna_ref = _ref_decoder(rna_common, rna_resid, rna_params, final_bn=True)
    atac_ref = _ref_decoder(atac_common, atac_resid, atac_params, final_bn=False)
    np.testing.assert_allclose(np.asarray(rna_out), np.asarray(rna_ref), rtol=1e-4, atol=1e-4)
    np.testing.assert_allclose(np.asarray(atac_out), np.asarray(atac_ref), rtol=1e-4, atol=1e-4)

    assert rna_out.shape == (B, rna_output_size)
    assert atac_out.shape == (B, atac_output_size)
    print("KERNEL_OK")
</pallas_src>

<mosaic_0001>
module attributes {stable_mosaic.version = 11 : i64} {
  func.func @_fused_decoder_kernel(%arg0: memref<8x512xf32, #tpu.memory_space<vmem>>, %arg1: memref<768x256xf32, #tpu.memory_space<vmem>>, %arg2: memref<1x1408xf32, #tpu.memory_space<vmem>>, %arg3: memref<8x256xf32, #tpu.memory_space<vmem>>) attributes {dimension_semantics = [], scalar_prefetch = 0 : i64, scratch_operands = 0 : i64, tpu.core_type = #tpu.core_type<tc>} {
    %c0 = arith.constant 0 : index
    %c0_0 = arith.constant 0 : index
    %0 = vector.load %arg2[%c0, %c0_0] : memref<1x1408xf32, #tpu.memory_space<vmem>>, vector<1x256xf32>
    %c0_1 = arith.constant 0 : index
    %c256 = arith.constant 256 : index
    %1 = vector.load %arg2[%c0_1, %c256] : memref<1x1408xf32, #tpu.memory_space<vmem>>, vector<1x256xf32>
    %c0_2 = arith.constant 0 : index
    %c512 = arith.constant 512 : index
    %2 = vector.load %arg2[%c0_2, %c512] : memref<1x1408xf32, #tpu.memory_space<vmem>>, vector<1x256xf32>
    %c0_3 = arith.constant 0 : index
    %c768 = arith.constant 768 : index
    %3 = vector.load %arg2[%c0_3, %c768] : memref<1x1408xf32, #tpu.memory_space<vmem>>, vector<1x256xf32>
    %c0_4 = arith.constant 0 : index
    %c1024 = arith.constant 1024 : index
    %4 = vector.load %arg2[%c0_4, %c1024] : memref<1x1408xf32, #tpu.memory_space<vmem>>, vector<1x128xf32>
    %c0_5 = arith.constant 0 : index
    %c1152 = arith.constant 1152 : index
    %5 = vector.load %arg2[%c0_5, %c1152] : memref<1x1408xf32, #tpu.memory_space<vmem>>, vector<1x128xf32>
    %c0_6 = arith.constant 0 : index
    %c1280 = arith.constant 1280 : index
    %6 = vector.load %arg2[%c0_6, %c1280] : memref<1x1408xf32, #tpu.memory_space<vmem>>, vector<1x128xf32>
    %c0_7 = arith.constant 0 : index
    %c0_8 = arith.constant 0 : index
    %7 = vector.load %arg1[%c0_7, %c0_8] : memref<768x256xf32, #tpu.memory_space<vmem>>, vector<256x256xf32>
    %c256_9 = arith.constant 256 : index
    %c0_10 = arith.constant 0 : index
    %8 = vector.load %arg1[%c256_9, %c0_10] : memref<768x256xf32, #tpu.memory_space<vmem>>, vector<256x256xf32>
    %c512_11 = arith.constant 512 : index
    %c0_12 = arith.constant 0 : index
    %9 = vector.load %arg1[%c512_11, %c0_12] : memref<768x256xf32, #tpu.memory_space<vmem>>, vector<256x256xf32>
    %c0_13 = arith.constant 0 : index
    %c0_14 = arith.constant 0 : index
    %10 = vector.load %arg0[%c0_13, %c0_14] : memref<8x512xf32, #tpu.memory_space<vmem>>, vector<8x256xf32>
    %c0_15 = arith.constant 0 : index
    %c256_16 = arith.constant 256 : index
    %11 = vector.load %arg0[%c0_15, %c256_16] : memref<8x512xf32, #tpu.memory_space<vmem>>, vector<8x256xf32>
    %12 = arith.addf %10, %11 : vector<8x256xf32>
    %cst = arith.constant dense<0.000000e+00> : vector<8x256xf32>
    %13 = tpu.matmul %12, %7, %cst {dimension_numbers = #tpu.dot_dimension_numbers<[1], [0], [0], [1], [0, 0, 1, 1], [], []>} : vector<8x256xf32>, vector<256x256xf32>, vector<8x256xf32> -> vector<8x256xf32>
    %cst_17 = arith.constant dense<0.000000e+00> : vector<256xf32>
    %14 = vector.multi_reduction <add>, %13, %cst_17 [0] : vector<8x256xf32> to vector<256xf32>
    %15 = vector.shape_cast %14 : vector<256xf32> to vector<1x256xf32>
    %cst_18 = arith.constant 8.000000e+00 : f32
    %16 = vector.broadcast %cst_18 : f32 to vector<1x256xf32>
    %17 = arith.divf %15, %16 : vector<1x256xf32>
    %18 = vector.broadcast %17 : vector<1x256xf32> to vector<8x256xf32>
    %19 = arith.subf %13, %18 : vector<8x256xf32>
    %20 = arith.mulf %19, %19 : vector<8x256xf32>
    %cst_19 = arith.constant dense<0.000000e+00> : vector<256xf32>
    %21 = vector.multi_reduction <add>, %20, %cst_19 [0] : vector<8x256xf32> to vector<256xf32>
    %22 = vector.shape_cast %21 : vector<256xf32> to vector<1x256xf32>
    %cst_20 = arith.constant 8.000000e+00 : f32
    %23 = vector.broadcast %cst_20 : f32 to vector<1x256xf32>
    %24 = arith.divf %22, %23 : vector<1x256xf32>
    %cst_21 = arith.constant 9.99999974E-6 : f32
    %25 = vector.broadcast %cst_21 : f32 to vector<1x256xf32>
    %26 = arith.addf %24, %25 : vector<1x256xf32>
    %27 = math.rsqrt %26 : vector<1x256xf32>
    %28 = arith.mulf %0, %27 : vector<1x256xf32>
    %29 = vector.broadcast %28 : vector<1x256xf32> to vector<8x256xf32>
    %30 = arith.mulf %19, %29 : vector<8x256xf32>
    %31 = vector.broadcast %1 : vector<1x256xf32> to vector<8x256xf32>
    %32 = arith.addf %30, %31 : vector<8x256xf32>
    %cst_22 = arith.constant 2.000000e-01 : f32
    %33 = vector.broadcast %cst_22 : f32 to vector<8x256xf32>
    %34 = arith.mulf %33, %32 : vector<8x256xf32>
    %35 = arith.maximumf %32, %34 : vector<8x256xf32>
    %cst_23 = arith.constant dense<0.000000e+00> : vector<8x256xf32>
    %36 = tpu.matmul %35, %8, %cst_23 {dimension_numbers = #tpu.dot_dimension_numbers<[1], [0], [0], [1], [0, 0, 1, 1], [], []>} : vector<8x256xf32>, vector<256x256xf32>, vector<8x256xf32> -> vector<8x256xf32>
    %cst_24 = arith.constant dense<0.000000e+00> : vector<256xf32>
    %37 = vector.multi_reduction <add>, %36, %cst_24 [0] : vector<8x256xf32> to vector<256xf32>
    %38 = vector.shape_cast %37 : vector<256xf32> to vector<1x256xf32>
    %cst_25 = arith.constant 8.000000e+00 : f32
    %39 = vector.broadcast %cst_25 : f32 to vector<1x256xf32>
    %40 = arith.divf %38, %39 : vector<1x256xf32>
    %41 = vector.broadcast %40 : vector<1x256xf32> to vector<8x256xf32>
    %42 = arith.subf %36, %41 : vector<8x256xf32>
    %43 = arith.mulf %42, %42 : vector<8x256xf32>
    %cst_26 = arith.constant dense<0.000000e+00> : vector<256xf32>
    %44 = vector.multi_reduction <add>, %43, %cst_26 [0] : vector<8x256xf32> to vector<256xf32>
    %45 = vector.shape_cast %44 : vector<256xf32> to vector<1x256xf32>
    %cst_27 = arith.constant 8.000000e+00 : f32
    %46 = vector.broadcast %cst_27 : f32 to vector<1x256xf32>
    %47 = arith.divf %45, %46 : vector<1x256xf32>
    %cst_28 = arith.constant 9.99999974E-6 : f32
    %48 = vector.broadcast %cst_28 : f32 to vector<1x256xf32>
    %49 = arith.addf %47, %48 : vector<1x256xf32>
    %50 = math.rsqrt %49 : vector<1x256xf32>
    %51 = arith.mulf %2, %50 : vector<1x256xf32>
    %52 = vector.broadcast %51 : vector<1x256xf32> to vector<8x256xf32>
    %53 = arith.mulf %42, %52 : vector<8x256xf32>
    %54 = vector.broadcast %3 : vector<1x256xf32> to vector<8x256xf32>
    %55 = arith.addf %53, %54 : vector<8x256xf32>
    %cst_29 = arith.constant 2.000000e-01 : f32
    %56 = vector.broadcast %cst_29 : f32 to vector<8x256xf32>
    %57 = arith.mulf %56, %55 : vector<8x256xf32>
    %58 = arith.maximumf %55, %57 : vector<8x256xf32>
    %cst_30 = arith.constant dense<0.000000e+00> : vector<8x256xf32>
    %59 = tpu.matmul %58, %9, %cst_30 {dimension_numbers = #tpu.dot_dimension_numbers<[1], [0], [0], [1], [0, 0, 1, 1], [], []>} : vector<8x256xf32>, vector<256x256xf32>, vector<8x256xf32> -> vector<8x256xf32>
    %60 = vector.extract_strided_slice %59 {offsets = [0, 0], sizes = [8, 128], strides = [1, 1]} : vector<8x256xf32> to vector<8x128xf32>
    %cst_31 = arith.constant dense<0.000000e+00> : vector<128xf32>
    %61 = vector.multi_reduction <add>, %60, %cst_31 [0] : vector<8x128xf32> to vector<128xf32>
    %62 = vector.shape_cast %61 : vector<128xf32> to vector<1x128xf32>
    %cst_32 = arith.constant 8.000000e+00 : f32
    %63 = vector.broadcast %cst_32 : f32 to vector<1x128xf32>
    %64 = arith.divf %62, %63 : vector<1x128xf32>
    %65 = vector.broadcast %64 : vector<1x128xf32> to vector<8x128xf32>
    %66 = arith.subf %60, %65 : vector<8x128xf32>
    %67 = arith.mulf %66, %66 : vector<8x128xf32>
    %cst_33 = arith.constant dense<0.000000e+00> : vector<128xf32>
    %68 = vector.multi_reduction <add>, %67, %cst_33 [0] : vector<8x128xf32> to vector<128xf32>
    %69 = vector.shape_cast %68 : vector<128xf32> to vector<1x128xf32>
    %cst_34 = arith.constant 8.000000e+00 : f32
    %70 = vector.broadcast %cst_34 : f32 to vector<1x128xf32>
    %71 = arith.divf %69, %70 : vector<1x128xf32>
    %cst_35 = arith.constant 9.99999974E-6 : f32
    %72 = vector.broadcast %cst_35 : f32 to vector<1x128xf32>
    %73 = arith.addf %71, %72 : vector<1x128xf32>
    %74 = math.rsqrt %73 : vector<1x128xf32>
    %75 = arith.mulf %4, %74 : vector<1x128xf32>
    %76 = vector.broadcast %75 : vector<1x128xf32> to vector<8x128xf32>
    %77 = arith.mulf %66, %76 : vector<8x128xf32>
    %78 = vector.broadcast %5 : vector<1x128xf32> to vector<8x128xf32>
    %79 = arith.addf %77, %78 : vector<8x128xf32>
    %c0_36 = arith.constant 0 : index
    %c0_37 = arith.constant 0 : index
    %80 = vector.load %arg3[%c0_36, %c0_37] : memref<8x256xf32, #tpu.memory_space<vmem>>, vector<8x128xf32>
    tpu.vector_store %arg3[%c0_36, %c0_37], %79 {strides = array<i32>} : memref<8x256xf32, #tpu.memory_space<vmem>>, vector<8x128xf32>,
    %81 = vector.extract_strided_slice %59 {offsets = [0, 128], sizes = [8, 128], strides = [1, 1]} : vector<8x256xf32> to vector<8x128xf32>
    %82 = vector.broadcast %6 : vector<1x128xf32> to vector<8x128xf32>
    %83 = arith.addf %81, %82 : vector<8x128xf32>
    %c0_38 = arith.constant 0 : index
    %c128 = arith.constant 128 : index
    %84 = vector.load %arg3[%c0_38, %c128] : memref<8x256xf32, #tpu.memory_space<vmem>>, vector<8x128xf32>
    tpu.vector_store %arg3[%c0_38, %c128], %83 {strides = array<i32>} : memref<8x256xf32, #tpu.memory_space<vmem>>, vector<8x128xf32>,
    return
  }
}

</mosaic_0001>

<llo_original>
// kernel: tpu_custom_call.1
$region0: #{tpu_custom_call.1}
  #allocation0 [shape = 'u32[]', space=smem, size = 0x4, offset = 0x4, fixed_abs, tag = 'smem constant byte address 0x4 - core index']
  #allocation1 [shape = 'u32[72,128]{1,0:T(1,128)}', space=vmem, size = 0x9000, scoped, tag = 'internal scratch']
  %s0 = inlined_call_operand.hbm [shape: f32[8,512], index: 0, kind: input, shape index: {}]
  %s1 = inlined_call_operand.hbm [shape: f32[768,256], index: 1, kind: input, shape index: {}]
  %s2 = inlined_call_operand.hbm [shape: f32[1,1408], index: 2, kind: input, shape index: {}]
  %s3 = inlined_call_operand.hbm [shape: f32[8,256], index: 3, kind: output, shape index: {}]
  %s4 = sld [smem:[#allocation0]]
  $region34: #{tpu_custom_call.1} parent=0
    _
  %s6 = ssub.s32 1, %s4
  %s7 = scalar_select 0, %s6, %s4
  $region1: #{tpu_custom_call.1} parent=0
    #allocation2 [shape = 'u8[16384]{0}', space=vmem, size = 0x4000, scoped, tag = 'input window, operand 0, single buffered']
    #allocation3 [shape = 's32[1]{0}', space=sflag, size = 0x4, scoped, tag = 'scoped memory for tpu_custom_call.1']
    #allocation4 [shape = 's32[1]{0}', space=sflag, size = 0x4, scoped, tag = 'scoped memory for tpu_custom_call.1']
    #allocation5 [shape = 'u8[786432]{0}', space=vmem, size = 0xc0000, scoped, tag = 'input window, operand 1, single buffered']
    #allocation6 [shape = 's32[1]{0}', space=sflag, size = 0x4, scoped, tag = 'scoped memory for tpu_custom_call.1']
    #allocation7 [shape = 'u8[5632]{0}', space=vmem, size = 0x1800, scoped, tag = 'input window, operand 2, single buffered']
    #allocation8 [shape = 'u8[8192]{0}', space=vmem, size = 0x2000, scoped, tag = 'output window, operand 0, single buffered']
    %8 = vsyncpa [#allocation3], 0
    %9 = vsyncpa [#allocation6], 0
    %10 = vsyncpa [#allocation4], 0
    // Predicated region
    $region2: #{tpu_custom_call.1} parent=1 // pred_check
      _
    $region3: #{tpu_custom_call.1} parent=1 // pred_check_branch
      %12 = sbr.rel (0) target = $region5
    $region4: #{tpu_custom_call.1} parent=1 // pred_region
      %14 = vsyncadd [#allocation3], 0
      %s16 = sshll.u32 %s0, 4
      %s17 = int_to_ptr.hbm [resolvable:$true] %s16
      %s18 = sshll.u32 [#allocation2], 4
      %s19 = int_to_ptr.vmem [resolvable:$true] %s18
      %21 = dma.hbm_to_vmem [thread:$0]  %s17, 512, %s19, [#allocation3]
    $region5: #{tpu_custom_call.1} parent=1 // pred_fallthru
      _
    // Predicated region
    $region6: #{tpu_custom_call.1} parent=1 // pred_check
      _
    $region7: #{tpu_custom_call.1} parent=1 // pred_check_branch
      %23 = sbr.rel (0) target = $region9
    $region8: #{tpu_custom_call.1} parent=1 // pred_region
      %25 = vsyncadd [#allocation6], 0
      %s26 = sshll.u32 %s1, 4
      %s27 = int_to_ptr.hbm [resolvable:$true] %s26
      %s28 = sshll.u32 [#allocation5], 4
      %s29 = int_to_ptr.vmem [resolvable:$true] %s28
      %34 = dma.hbm_to_vmem [thread:$0]  %s27, 24576, %s29, [#allocation6], 256, 256, 16
    $region9: #{tpu_custom_call.1} parent=1 // pred_fallthru
      _
    // Predicated region
    $region10: #{tpu_custom_call.1} parent=1 // pred_check
      _
    $region11: #{tpu_custom_call.1} parent=1 // pred_check_branch
      %36 = sbr.rel (0) target = $region13
    $region12: #{tpu_custom_call.1} parent=1 // pred_region
      %38 = vsyncadd [#allocation6], 0
      %s40 = sshll.u32 %s2, 4
      %s41 = int_to_ptr.hbm [resolvable:$true] %s40
      %s42 = sshll.u32 [#allocation7], 4
      %s43 = int_to_ptr.vmem [resolvable:$true] %s42
      %45 = dma.hbm_to_vmem [thread:$0]  %s41, 176, %s43, [#allocation6]
    $region13: #{tpu_custom_call.1} parent=1 // pred_fallthru
      _
    // Predicated region
    $region14: #{tpu_custom_call.1} parent=1 // pred_check
      _
    $region15: #{tpu_custom_call.1} parent=1 // pred_check_branch
      %47 = sbr.rel (0) target = $region17
    $region16: #{tpu_custom_call.1} parent=1 // pred_region
      %49 = dma.done [#allocation3], 512
    $region17: #{tpu_custom_call.1} parent=1 // pred_fallthru
      _
    // Predicated region
    $region18: #{tpu_custom_call.1} parent=1 // pred_check
      _
    $region19: #{tpu_custom_call.1} parent=1 // pred_check_branch
      %51 = sbr.rel (0) target = $region21
    $region20: #{tpu_custom_call.1} parent=1 // pred_region
      %53 = dma.done [#allocation6], 24576
    $region21: #{tpu_custom_call.1} parent=1 // pred_fallthru
      _
    // Predicated region
    $region22: #{tpu_custom_call.1} parent=1 // pred_check
      _
    $region23: #{tpu_custom_call.1} parent=1 // pred_check_branch
      %55 = sbr.rel (0) target = $region25
    $region24: #{tpu_custom_call.1} parent=1 // pred_region
      %57 = dma.done [#allocation6], 176
    $region25: #{tpu_custom_call.1} parent=1 // pred_fallthru
      _
    %v58 = vld [vmem:[#allocation7] sm:$0x3]
    %v59 = vld [vmem:[#allocation7 + $0x2] sm:$0x3]
    %v60 = vld [vmem:[#allocation7 + $0x4] sm:$0x3]
    %v61 = vld [vmem:[#allocation7 + $0x6] sm:$0x3]
    %v62 = vld [vmem:[#allocation7 + $0x8] sm:$0x1]
    %v63 = vld [vmem:[#allocation7 + $0x9] sm:$0x1]
    %v64 = vld [vmem:[#allocation7 + $0xa] sm:$0x1]
    %v65 = vld [vmem:[#allocation5] sm:$0xff]
    %v66 = vld [vmem:[#allocation5 + $0x8] sm:$0xff]
    %v67 = vld [vmem:[#allocation5 + $0x10] sm:$0xff]
    %v68 = vld [vmem:[#allocation5 + $0x18] sm:$0xff]
    %v69 = vld [vmem:[#allocation5 + $0x20] sm:$0xff]
    %v70 = vld [vmem:[#allocation5 + $0x28] sm:$0xff]
    %v71 = vld [vmem:[#allocation5 + $0x30] sm:$0xff]
    %v72 = vld [vmem:[#allocation5 + $0x38] sm:$0xff]
    %v73 = vld [vmem:[#allocation5 + $0x40] sm:$0xff]
    %v74 = vld [vmem:[#allocation5 + $0x48] sm:$0xff]
    %v75 = vld [vmem:[#allocation5 + $0x50] sm:$0xff]
    %v76 = vld [vmem:[#allocation5 + $0x58] sm:$0xff]
    %v77 = vld [vmem:[#allocation5 + $0x60] sm:$0xff]
    %v78 = vld [vmem:[#allocation5 + $0x68] sm:$0xff]
    %v79 = vld [vmem:[#allocation5 + $0x70] sm:$0xff]
    %v80 = vld [vmem:[#allocation5 + $0x78] sm:$0xff]
    %v81 = vld [vmem:[#allocation5 + $0x80] sm:$0xff]
    %v82 = vld [vmem:[#allocation5 + $0x88] sm:$0xff]
    %v83 = vld [vmem:[#allocation5 + $0x90] sm:$0xff]
    %v84 = vld [vmem:[#allocation5 + $0x98] sm:$0xff]
    %v85 = vld [vmem:[#allocation5 + $0xa0] sm:$0xff]
    %v86 = vld [vmem:[#allocation5 + $0xa8] sm:$0xff]
    %v87 = vld [vmem:[#allocation5 + $0xb0] sm:$0xff]
    %v88 = vld [vmem:[#allocation5 + $0xb8] sm:$0xff]
    %v89 = vld [vmem:[#allocation5 + $0xc0] sm:$0xff]
    %v90 = vld [vmem:[#allocation5 + $0xc8] sm:$0xff]
    %v91 = vld [vmem:[#allocation5 + $0xd0] sm:$0xff]
    %v92 = vld [vmem:[#allocation5 + $0xd8] sm:$0xff]
    %v93 = vld [vmem:[#allocation5 + $0xe0] sm:$0xff]
    %v94 = vld [vmem:[#allocation5 + $0xe8] sm:$0xff]
    %v95 = vld [vmem:[#allocation5 + $0xf0] sm:$0xff]
    %v96 = vld [vmem:[#allocation5 + $0xf8] sm:$0xff]
    %v97 = vld [vmem:[#allocation5 + $0x100] sm:$0xff]
    %v98 = vld [vmem:[#allocation5 + $0x108] sm:$0xff]
    %v99 = vld [vmem:[#allocation5 + $0x110] sm:$0xff]
    %v100 = vld [vmem:[#allocation5 + $0x118] sm:$0xff]
    %v101 = vld [vmem:[#allocation5 + $0x120] sm:$0xff]
    %v102 = vld [vmem:[#allocation5 + $0x128] sm:$0xff]
    %v103 = vld [vmem:[#allocation5 + $0x130] sm:$0xff]
    %v104 = vld [vmem:[#allocation5 + $0x138] sm:$0xff]
    %v105 = vld [vmem:[#allocation5 + $0x140] sm:$0xff]
    %v106 = vld [vmem:[#allocation5 + $0x148] sm:$0xff]
    %v107 = vld [vmem:[#allocation5 + $0x150] sm:$0xff]
    %v108 = vld [vmem:[#allocation5 + $0x158] sm:$0xff]
    %v109 = vld [vmem:[#allocation5 + $0x160] sm:$0xff]
    %v110 = vld [vmem:[#allocation5 + $0x168] sm:$0xff]
    %v111 = vld [vmem:[#allocation5 + $0x170] sm:$0xff]
    %v112 = vld [vmem:[#allocation5 + $0x178] sm:$0xff]
    %v113 = vld [vmem:[#allocation5 + $0x180] sm:$0xff]
    %v114 = vld [vmem:[#allocation5 + $0x188] sm:$0xff]
    %v115 = vld [vmem:[#allocation5 + $0x190] sm:$0xff]
    %v116 = vld [vmem:[#allocation5 + $0x198] sm:$0xff]
    %v117 = vld [vmem:[#allocation5 + $0x1a0] sm:$0xff]
    %v118 = vld [vmem:[#allocation5 + $0x1a8] sm:$0xff]
    %v119 = vld [vmem:[#allocation5 + $0x1b0] sm:$0xff]
    %v120 = vld [vmem:[#allocation5 + $0x1b8] sm:$0xff]
    %v121 = vld [vmem:[#allocation5 + $0x1c0] sm:$0xff]
    %v122 = vld [vmem:[#allocation5 + $0x1c8] sm:$0xff]
    %v123 = vld [vmem:[#allocation5 + $0x1d0] sm:$0xff]
    %v124 = vld [vmem:[#allocation5 + $0x1d8] sm:$0xff]
    %v125 = vld [vmem:[#allocation5 + $0x1e0] sm:$0xff]
    %v126 = vld [vmem:[#allocation5 + $0x1e8] sm:$0xff]
    %v127 = vld [vmem:[#allocation5 + $0x1f0] sm:$0xff]
    %v128 = vld [vmem:[#allocation5 + $0x1f8] sm:$0xff]
    %v129 = vld [vmem:[#allocation5 + $0x200] sm:$0xff]
    %v130 = vld [vmem:[#allocation5 + $0x208] sm:$0xff]
    %v131 = vld [vmem:[#allocation5 + $0x210] sm:$0xff]
    %v132 = vld [vmem:[#allocation5 + $0x218] sm:$0xff]
    %v133 = vld [vmem:[#allocation5 + $0x220] sm:$0xff]
    %v134 = vld [vmem:[#allocation5 + $0x228] sm:$0xff]
    %v135 = vld [vmem:[#allocation5 + $0x230] sm:$0xff]
    %v136 = vld [vmem:[#allocation5 + $0x238] sm:$0xff]
    %v137 = vld [vmem:[#allocation5 + $0x240] sm:$0xff]
    %v138 = vld [vmem:[#allocation5 + $0x248] sm:$0xff]
    %v139 = vld [vmem:[#allocation5 + $0x250] sm:$0xff]
    %v140 = vld [vmem:[#allocation5 + $0x258] sm:$0xff]
    %v141 = vld [vmem:[#allocation5 + $0x260] sm:$0xff]
    %v142 = vld [vmem:[#allocation5 + $0x268] sm:$0xff]
    %v143 = vld [vmem:[#allocation5 + $0x270] sm:$0xff]
    %v144 = vld [vmem:[#allocation5 + $0x278] sm:$0xff]
    %v145 = vld [vmem:[#allocation5 + $0x280] sm:$0xff]
    %v146 = vld [vmem:[#allocation5 + $0x288] sm:$0xff]
    %v147 = vld [vmem:[#allocation5 + $0x290] sm:$0xff]
    %v148 = vld [vmem:[#allocation5 + $0x298] sm:$0xff]
    %v149 = vld [vmem:[#allocation5 + $0x2a0] sm:$0xff]
    %v150 = vld [vmem:[#allocation5 + $0x2a8] sm:$0xff]
    %v151 = vld [vmem:[#allocation5 + $0x2b0] sm:$0xff]
    %v152 = vld [vmem:[#allocation5 + $0x2b8] sm:$0xff]
    %v153 = vld [vmem:[#allocation5 + $0x2c0] sm:$0xff]
    %v154 = vld [vmem:[#allocation5 + $0x2c8] sm:$0xff]
    %v155 = vld [vmem:[#allocation5 + $0x2d0] sm:$0xff]
    %v156 = vld [vmem:[#allocation5 + $0x2d8] sm:$0xff]
    %v157 = vld [vmem:[#allocation5 + $0x2e0] sm:$0xff]
    %v158 = vld [vmem:[#allocation5 + $0x2e8] sm:$0xff]
    %v159 = vld [vmem:[#allocation5 + $0x2f0] sm:$0xff]
    %v160 = vld [vmem:[#allocation5 + $0x2f8] sm:$0xff]
    %v161 = vld [vmem:[#allocation5 + $0x300] sm:$0xff]
    %v162 = vld [vmem:[#allocation5 + $0x308] sm:$0xff]
    %v163 = vld [vmem:[#allocation5 + $0x310] sm:$0xff]
    %v164 = vld [vmem:[#allocation5 + $0x318] sm:$0xff]
    %v165 = vld [vmem:[#allocation5 + $0x320] sm:$0xff]
    %v166 = vld [vmem:[#allocation5 + $0x328] sm:$0xff]
    %v167 = vld [vmem:[#allocation5 + $0x330] sm:$0xff]
    %v168 = vld [vmem:[#allocation5 + $0x338] sm:$0xff]
    %v169 = vld [vmem:[#allocation5 + $0x340] sm:$0xff]
    %v170 = vld [vmem:[#allocation5 + $0x348] sm:$0xff]
    %v171 = vld [vmem:[#allocation5 + $0x350] sm:$0xff]
    %v172 = vld [vmem:[#allocation5 + $0x358] sm:$0xff]
    %v173 = vld [vmem:[#allocation5 + $0x360] sm:$0xff]
    %v174 = vld [vmem:[#allocation5 + $0x368] sm:$0xff]
    %v175 = vld [vmem:[#allocation5 + $0x370] sm:$0xff]
    %v176 = vld [vmem:[#allocation5 + $0x378] sm:$0xff]
    %v177 = vld [vmem:[#allocation5 + $0x380] sm:$0xff]
    %v178 = vld [vmem:[#allocation5 + $0x388] sm:$0xff]
    %v179 = vld [vmem:[#allocation5 + $0x390] sm:$0xff]
    %v180 = vld [vmem:[#allocation5 + $0x398] sm:$0xff]
    %v181 = vld [vmem:[#allocation5 + $0x3a0] sm:$0xff]
    %v182 = vld [vmem:[#allocation5 + $0x3a8] sm:$0xff]
    %v183 = vld [vmem:[#allocation5 + $0x3b0] sm:$0xff]
    %v184 = vld [vmem:[#allocation5 + $0x3b8] sm:$0xff]
    %v185 = vld [vmem:[#allocation5 + $0x3c0] sm:$0xff]
    %v186 = vld [vmem:[#allocation5 + $0x3c8] sm:$0xff]
    %v187 = vld [vmem:[#allocation5 + $0x3d0] sm:$0xff]
    %v188 = vld [vmem:[#allocation5 + $0x3d8] sm:$0xff]
    %v189 = vld [vmem:[#allocation5 + $0x3e0] sm:$0xff]
    %v190 = vld [vmem:[#allocation5 + $0x3e8] sm:$0xff]
    %v191 = vld [vmem:[#allocation5 + $0x3f0] sm:$0xff]
    %v192 = vld [vmem:[#allocation5 + $0x3f8] sm:$0xff]
    %v193 = vld [vmem:[#allocation5 + $0x400] sm:$0xff]
    %v194 = vld [vmem:[#allocation5 + $0x408] sm:$0xff]
    %v195 = vld [vmem:[#allocation5 + $0x410] sm:$0xff]
    %v196 = vld [vmem:[#allocation5 + $0x418] sm:$0xff]
    %v197 = vld [vmem:[#allocation5 + $0x420] sm:$0xff]
    %v198 = vld [vmem:[#allocation5 + $0x428] sm:$0xff]
    %v199 = vld [vmem:[#allocation5 + $0x430] sm:$0xff]
    %v200 = vld [vmem:[#allocation5 + $0x438] sm:$0xff]
    %v201 = vld [vmem:[#allocation5 + $0x440] sm:$0xff]
    %v202 = vld [vmem:[#allocation5 + $0x448] sm:$0xff]
    %v203 = vld [vmem:[#allocation5 + $0x450] sm:$0xff]
    %v204 = vld [vmem:[#allocation5 + $0x458] sm:$0xff]
    %v205 = vld [vmem:[#allocation5 + $0x460] sm:$0xff]
    %v206 = vld [vmem:[#allocation5 + $0x468] sm:$0xff]
    %v207 = vld [vmem:[#allocation5 + $0x470] sm:$0xff]
    %v208 = vld [vmem:[#allocation5 + $0x478] sm:$0xff]
    %v209 = vld [vmem:[#allocation5 + $0x480] sm:$0xff]
    %v210 = vld [vmem:[#allocation5 + $0x488] sm:$0xff]
    %v211 = vld [vmem:[#allocation5 + $0x490] sm:$0xff]
    %v212 = vld [vmem:[#allocation5 + $0x498] sm:$0xff]
    %v213 = vld [vmem:[#allocation5 + $0x4a0] sm:$0xff]
    %v214 = vld [vmem:[#allocation5 + $0x4a8] sm:$0xff]
    %v215 = vld [vmem:[#allocation5 + $0x4b0] sm:$0xff]
    %v216 = vld [vmem:[#allocation5 + $0x4b8] sm:$0xff]
    %v217 = vld [vmem:[#allocation5 + $0x4c0] sm:$0xff]
    %v218 = vld [vmem:[#allocation5 + $0x4c8] sm:$0xff]
    %v219 = vld [vmem:[#allocation5 + $0x4d0] sm:$0xff]
    %v220 = vld [vmem:[#allocation5 + $0x4d8] sm:$0xff]
    %v221 = vld [vmem:[#allocation5 + $0x4e0] sm:$0xff]
    %v222 = vld [vmem:[#allocation5 + $0x4e8] sm:$0xff]
    %v223 = vld [vmem:[#allocation5 + $0x4f0] sm:$0xff]
    %v224 = vld [vmem:[#allocation5 + $0x4f8] sm:$0xff]
    %v225 = vld [vmem:[#allocation5 + $0x500] sm:$0xff]
    %v226 = vld [vmem:[#allocation5 + $0x508] sm:$0xff]
    %v227 = vld [vmem:[#allocation5 + $0x510] sm:$0xff]
    %v228 = vld [vmem:[#allocation5 + $0x518] sm:$0xff]
    %v229 = vld [vmem:[#allocation5 + $0x520] sm:$0xff]
    %v230 = vld [vmem:[#allocation5 + $0x528] sm:$0xff]
    %v231 = vld [vmem:[#allocation5 + $0x530] sm:$0xff]
    %v232 = vld [vmem:[#allocation5 + $0x538] sm:$0xff]
    %v233 = vld [vmem:[#allocation5 + $0x540] sm:$0xff]
    %v234 = vld [vmem:[#allocation5 + $0x548] sm:$0xff]
    %v235 = vld [vmem:[#allocation5 + $0x550] sm:$0xff]
    %v236 = vld [vmem:[#allocation5 + $0x558] sm:$0xff]
    %v237 = vld [vmem:[#allocation5 + $0x560] sm:$0xff]
    %v238 = vld [vmem:[#allocation5 + $0x568] sm:$0xff]
    %v239 = vld [vmem:[#allocation5 + $0x570] sm:$0xff]
    %v240 = vld [vmem:[#allocation5 + $0x578] sm:$0xff]
    %v241 = vld [vmem:[#allocation5 + $0x580] sm:$0xff]
    %v242 = vld [vmem:[#allocation5 + $0x588] sm:$0xff]
    %v243 = vld [vmem:[#allocation5 + $0x590] sm:$0xff]
    %v244 = vld [vmem:[#allocation5 + $0x598] sm:$0xff]
    %v245 = vld [vmem:[#allocation5 + $0x5a0] sm:$0xff]
    %v246 = vld [vmem:[#allocation5 + $0x5a8] sm:$0xff]
    %v247 = vld [vmem:[#allocation5 + $0x5b0] sm:$0xff]
    %v248 = vld [vmem:[#allocation5 + $0x5b8] sm:$0xff]
    %v249 = vld [vmem:[#allocation5 + $0x5c0] sm:$0xff]
    %v250 = vld [vmem:[#allocation5 + $0x5c8] sm:$0xff]
    %v251 = vld [vmem:[#allocation5 + $0x5d0] sm:$0xff]
    %v252 = vld [vmem:[#allocation5 + $0x5d8] sm:$0xff]
    %v253 = vld [vmem:[#allocation5 + $0x5e0] sm:$0xff]
    %v254 = vld [vmem:[#allocation5 + $0x5e8] sm:$0xff]
    %v255 = vld [vmem:[#allocation5 + $0x5f0] sm:$0xff]
    %v256 = vld [vmem:[#allocation5 + $0x5f8] sm:$0xff]
    %v257 = vld [vmem:[#allocation2] sm:$0xff]
    %v258 = vld [vmem:[#allocation2 + $0x8] sm:$0xff]
    %v259 = vld [vmem:[#allocation2 + $0x10] sm:$0xff]
    %v260 = vld [vmem:[#allocation2 + $0x18] sm:$0xff]
    %v261 = vadd.f32 %v257, %v259
    %v262 = vadd.f32 %v258, %v260
    %263 = vmatpush.msra.mxu0 %v95
    %264 = vmatpush.msra.mxu0 %v93
    %265 = vmatpush.msra.mxu0 %v91
    %266 = vmatpush.msra.mxu0 %v89
    %267 = vmatpush.msra.mxu0 %v87
    %268 = vmatpush.msra.mxu0 %v85
    %269 = vmatpush.msra.mxu0 %v83
    %270 = vmatpush.msra.mxu0 %v81
    %271 = vmatpush.msra.mxu0 %v79
    %272 = vmatpush.msra.mxu0 %v77
    %273 = vmatpush.msra.mxu0 %v75
    %274 = vmatpush.msra.mxu0 %v73
    %275 = vmatpush.msra.mxu0 %v71
    %276 = vmatpush.msra.mxu0 %v69
    %277 = vmatpush.msra.mxu0 %v67
    %278 = vmatpush.msra.mxu0 %v65
    %279 = vmatmul.f32.gmra.mxu0 %v261
    %v280 = vpop.f32.mrf.mxu0
    %v281 = vadd.f32 0.0, %v280
    %282 = vdwg.mxu0
    %283 = vmatpush.msra.mxu0 %v127
    %284 = vmatpush.msra.mxu0 %v125
    %285 = vmatpush.msra.mxu0 %v123
    %286 = vmatpush.msra.mxu0 %v121
    %287 = vmatpush.msra.mxu0 %v119
    %288 = vmatpush.msra.mxu0 %v117
    %289 = vmatpush.msra.mxu0 %v115
    %290 = vmatpush.msra.mxu0 %v113
    %291 = vmatpush.msra.mxu0 %v111
    %292 = vmatpush.msra.mxu0 %v109
    %293 = vmatpush.msra.mxu0 %v107
    %294 = vmatpush.msra.mxu0 %v105
    %295 = vmatpush.msra.mxu0 %v103
    %296 = vmatpush.msra.mxu0 %v101
    %297 = vmatpush.msra.mxu0 %v99
    %298 = vmatpush.msra.mxu0 %v97
    %299 = vmatmul.f32.gmra.mxu0 %v262
    %v300 = vpop.f32.mrf.mxu0
    %v301 = vadd.f32 %v281, %v300
    %302 = vdwg.mxu0
    %303 = vmatpush.msra.mxu0 %v96
    %304 = vmatpush.msra.mxu0 %v94
    %305 = vmatpush.msra.mxu0 %v92
    %306 = vmatpush.msra.mxu0 %v90
    %307 = vmatpush.msra.mxu0 %v88
    %308 = vmatpush.msra.mxu0 %v86
    %309 = vmatpush.msra.mxu0 %v84
    %310 = vmatpush.msra.mxu0 %v82
    %311 = vmatpush.msra.mxu0 %v80
    %312 = vmatpush.msra.mxu0 %v78
    %313 = vmatpush.msra.mxu0 %v76
    %314 = vmatpush.msra.mxu0 %v74
    %315 = vmatpush.msra.mxu0 %v72
    %316 = vmatpush.msra.mxu0 %v70
    %317 = vmatpush.msra.mxu0 %v68
    %318 = vmatpush.msra.mxu0 %v66
    %319 = vmatmul.f32.gmra.mxu0 %v261
    %v320 = vpop.f32.mrf.mxu0
    %v321 = vadd.f32 0.0, %v320
    %322 = vdwg.mxu0
    %323 = vmatpush.msra.mxu0 %v128
    %324 = vmatpush.msra.mxu0 %v126
    %325 = vmatpush.msra.mxu0 %v124
    %326 = vmatpush.msra.mxu0 %v122
    %327 = vmatpush.msra.mxu0 %v120
    %328 = vmatpush.msra.mxu0 %v118
    %329 = vmatpush.msra.mxu0 %v116
    %330 = vmatpush.msra.mxu0 %v114
    %331 = vmatpush.msra.mxu0 %v112
    %332 = vmatpush.msra.mxu0 %v110
    %333 = vmatpush.msra.mxu0 %v108
    %334 = vmatpush.msra.mxu0 %v106
    %335 = vmatpush.msra.mxu0 %v104
    %336 = vmatpush.msra.mxu0 %v102
    %337 = vmatpush.msra.mxu0 %v100
    %338 = vmatpush.msra.mxu0 %v98
    %339 = vmatmul.f32.gmra.mxu0 %v262
    %v340 = vpop.f32.mrf.mxu0
    %v341 = vadd.f32 %v321, %v340
    %342 = vdwg.mxu0
    %v343 = vrot.slane %v301, 4
    %v344 = vadd.f32 %v301, %v343
    %v345 = vrot.slane %v344, 2
    %v346 = vadd.f32 %v344, %v345
    %v347 = vrot.slane %v346, 1
    %v348 = vadd.f32 %v346, %v347
    %v349 = vrot.slane %v341, 4
    %v350 = vadd.f32 %v341, %v349
    %v351 = vrot.slane %v350, 2
    %v352 = vadd.f32 %v350, %v351
    %v353 = vrot.slane %v352, 1
    %v354 = vadd.f32 %v352, %v353
    %v355 = vrcp.pop 8.0
    %v356 = vmul.f32 8.0, %v355
    %v357 = vsub.f32 1.0, %v356
    %v358 = vmul.f32 %v355, %v357
    %v359 = vadd.f32 %v355, %v358
    %vm360 = vweird.f32 %v355
    %v361 = vsel %vm360, %v355, %v359
    %v362 = vmul.f32 %v348, %v361
    %v363 = vmul.f32 %v354, %v361
    %v364 = vsub.f32 %v301, %v362
    %v365 = vsub.f32 %v341, %v363
    %v366 = vmul.f32 %v364, %v364
    %v367 = vmul.f32 %v365, %v365
    %v368 = vrot.slane %v366, 4
    %v369 = vadd.f32 %v366, %v368
    %v370 = vrot.slane %v369, 2
    %v371 = vadd.f32 %v369, %v370
    %v372 = vrot.slane %v371, 1
    %v373 = vadd.f32 %v371, %v372
    %v374 = vrot.slane %v367, 4
    %v375 = vadd.f32 %v367, %v374
    %v376 = vrot.slane %v375, 2
    %v377 = vadd.f32 %v375, %v376
    %v378 = vrot.slane %v377, 1
    %v379 = vadd.f32 %v377, %v378
    %v380 = vmul.f32 %v373, %v361
    %v381 = vmul.f32 %v379, %v361
    %v382 = vadd.f32 %v380, 1e-05
    %v383 = vadd.f32 %v381, 1e-05
    %v384 = vrsqrt.pop %v382
    %v385 = vmul.f32 %v384, %v382
    %v386 = vmul.f32 %v385, %v384
    %v387 = vmul.f32 0.5, %v386
    %v388 = vsub.f32 1.5, %v387
    %v389 = vmul.f32 %v384, %v388
    %vm390 = vweird.f32 %v382
    %vm391 = vweird.f32 %v384
    %vm392 = vmor %vm390, %vm391
    %v393 = vsel %vm392, %v384, %v389
    %v394 = vrsqrt.pop %v383
    %v395 = vmul.f32 %v394, %v383
    %v396 = vmul.f32 %v395, %v394
    %v397 = vmul.f32 0.5, %v396
    %v398 = vsub.f32 1.5, %v397
    %v399 = vmul.f32 %v394, %v398
    %vm400 = vweird.f32 %v383
    %vm401 = vweird.f32 %v394
    %vm402 = vmor %vm400, %vm401
    %v403 = vsel %vm402, %v394, %v399
    %v406 = vrot.slane %v403, 7
    %vm407 = vcmask 1040384
    %v408 = vsel %vm407, %v393, %v406
    %v410 = vmul.f32 %v58, %v408
    %v412 = vperm.slane %v410, 0
    %v413 = vperm.slane %v410, 1
    %v416 = vmul.f32 %v364, %v412
    %v417 = vmul.f32 %v365, %v413
    %v419 = vperm.slane %v59, 0
    %v420 = vperm.slane %v59, 1
    %v423 = vadd.f32 %v416, %v419
    %v424 = vadd.f32 %v417, %v420
    %v425 = vmul.f32 %v423, 0.2
    %v426 = vmul.f32 %v424, 0.2
    %v427 = vmax.f32 %v423, %v425
    %v428 = vmax.f32 %v424, %v426
    %429 = vmatpush.msra.mxu0 %v159
    %430 = vmatpush.msra.mxu0 %v157
    %431 = vmatpush.msra.mxu0 %v155
    %432 = vmatpush.msra.mxu0 %v153
    %433 = vmatpush.msra.mxu0 %v151
    %434 = vmatpush.msra.mxu0 %v149
    %435 = vmatpush.msra.mxu0 %v147
    %436 = vmatpush.msra.mxu0 %v145
    %437 = vmatpush.msra.mxu0 %v143
    %438 = vmatpush.msra.mxu0 %v141
    %439 = vmatpush.msra.mxu0 %v139
    %440 = vmatpush.msra.mxu0 %v137
    %441 = vmatpush.msra.mxu0 %v135
    %442 = vmatpush.msra.mxu0 %v133
    %443 = vmatpush.msra.mxu0 %v131
    %444 = vmatpush.msra.mxu0 %v129
    %445 = vmatmul.f32.gmra.mxu0 %v427
    %v446 = vpop.f32.mrf.mxu0
    %v447 = vadd.f32 0.0, %v446
    %448 = vdwg.mxu0
    %449 = vmatpush.msra.mxu0 %v191
    %450 = vmatpush.msra.mxu0 %v189
    %451 = vmatpush.msra.mxu0 %v187
    %452 = vmatpush.msra.mxu0 %v185
    %453 = vmatpush.msra.mxu0 %v183
    %454 = vmatpush.msra.mxu0 %v181
    %455 = vmatpush.msra.mxu0 %v179
    %456 = vmatpush.msra.mxu0 %v177
    %457 = vmatpush.msra.mxu0 %v175
    %458 = vmatpush.msra.mxu0 %v173
    %459 = vmatpush.msra.mxu0 %v171
    %460 = vmatpush.msra.mxu0 %v169
    %461 = vmatpush.msra.mxu0 %v167
    %462 = vmatpush.msra.mxu0 %v165
    %463 = vmatpush.msra.mxu0 %v163
    %464 = vmatpush.msra.mxu0 %v161
    %465 = vmatmul.f32.gmra.mxu0 %v428
    %v466 = vpop.f32.mrf.mxu0
    %v467 = vadd.f32 %v447, %v466
    %468 = vdwg.mxu0
    %469 = vmatpush.msra.mxu0 %v160
    %470 = vmatpush.msra.mxu0 %v158
    %471 = vmatpush.msra.mxu0 %v156
    %472 = vmatpush.msra.mxu0 %v154
    %473 = vmatpush.msra.mxu0 %v152
    %474 = vmatpush.msra.mxu0 %v150
    %475 = vmatpush.msra.mxu0 %v148
    %476 = vmatpush.msra.mxu0 %v146
    %477 = vmatpush.msra.mxu0 %v144
    %478 = vmatpush.msra.mxu0 %v142
    %479 = vmatpush.msra.mxu0 %v140
    %480 = vmatpush.msra.mxu0 %v138
    %481 = vmatpush.msra.mxu0 %v136
    %482 = vmatpush.msra.mxu0 %v134
    %483 = vmatpush.msra.mxu0 %v132
    %484 = vmatpush.msra.mxu0 %v130
    %485 = vmatmul.f32.gmra.mxu0 %v427
    %v486 = vpop.f32.mrf.mxu0
    %v487 = vadd.f32 0.0, %v486
    %488 = vdwg.mxu0
    %489 = vmatpush.msra.mxu0 %v192
    %490 = vmatpush.msra.mxu0 %v190
    %491 = vmatpush.msra.mxu0 %v188
    %492 = vmatpush.msra.mxu0 %v186
    %493 = vmatpush.msra.mxu0 %v184
    %494 = vmatpush.msra.mxu0 %v182
    %495 = vmatpush.msra.mxu0 %v180
    %496 = vmatpush.msra.mxu0 %v178
    %497 = vmatpush.msra.mxu0 %v176
    %498 = vmatpush.msra.mxu0 %v174
    %499 = vmatpush.msra.mxu0 %v172
    %500 = vmatpush.msra.mxu0 %v170
    %501 = vmatpush.msra.mxu0 %v168
    %502 = vmatpush.msra.mxu0 %v166
    %503 = vmatpush.msra.mxu0 %v164
    %504 = vmatpush.msra.mxu0 %v162
    %505 = vmatmul.f32.gmra.mxu0 %v428
    %v506 = vpop.f32.mrf.mxu0
    %v507 = vadd.f32 %v487, %v506
    %508 = vdwg.mxu0
    %v509 = vrot.slane %v467, 4
    %v510 = vadd.f32 %v467, %v509
    %v511 = vrot.slane %v510, 2
    %v512 = vadd.f32 %v510, %v511
    %v513 = vrot.slane %v512, 1
    %v514 = vadd.f32 %v512, %v513
    %v515 = vrot.slane %v507, 4
    %v516 = vadd.f32 %v507, %v515
    %v517 = vrot.slane %v516, 2
    %v518 = vadd.f32 %v516, %v517
    %v519 = vrot.slane %v518, 1
    %v520 = vadd.f32 %v518, %v519
    %v521 = vmul.f32 %v514, %v361
    %v522 = vmul.f32 %v520, %v361
    %v523 = vsub.f32 %v467, %v521
    %v524 = vsub.f32 %v507, %v522
    %v525 = vmul.f32 %v523, %v523
    %v526 = vmul.f32 %v524, %v524
    %v527 = vrot.slane %v525, 4
    %v528 = vadd.f32 %v525, %v527
    %v529 = vrot.slane %v528, 2
    %v530 = vadd.f32 %v528, %v529
    %v531 = vrot.slane %v530, 1
    %v532 = vadd.f32 %v530, %v531
    %v533 = vrot.slane %v526, 4
    %v534 = vadd.f32 %v526, %v533
    %v535 = vrot.slane %v534, 2
    %v536 = vadd.f32 %v534, %v535
    %v537 = vrot.slane %v536, 1
    %v538 = vadd.f32 %v536, %v537
    %v539 = vmul.f32 %v532, %v361
    %v540 = vmul.f32 %v538, %v361
    %v541 = vadd.f32 %v539, 1e-05
    %v542 = vadd.f32 %v540, 1e-05
    %v543 = vrsqrt.pop %v541
    %v544 = vmul.f32 %v543, %v541
    %v545 = vmul.f32 %v544, %v543
    %v546 = vmul.f32 0.5, %v545
    %v547 = vsub.f32 1.5, %v546
    %v548 = vmul.f32 %v543, %v547
    %vm549 = vweird.f32 %v541
    %vm550 = vweird.f32 %v543
    %vm551 = vmor %vm549, %vm550
    %v552 = vsel %vm551, %v543, %v548
    %v553 = vrsqrt.pop %v542
    %v554 = vmul.f32 %v553, %v542
    %v555 = vmul.f32 %v554, %v553
    %v556 = vmul.f32 0.5, %v555
    %v557 = vsub.f32 1.5, %v556
    %v558 = vmul.f32 %v553, %v557
    %vm559 = vweird.f32 %v542
    %vm560 = vweird.f32 %v553
    %vm561 = vmor %vm559, %vm560
    %v562 = vsel %vm561, %v553, %v558
    %v565 = vrot.slane %v562, 7
    %v566 = vsel %vm407, %v552, %v565
    %v568 = vmul.f32 %v60, %v566
    %v570 = vperm.slane %v568, 0
    %v571 = vperm.slane %v568, 1
    %v574 = vmul.f32 %v523, %v570
    %v575 = vmul.f32 %v524, %v571
    %v577 = vperm.slane %v61, 0
    %v578 = vperm.slane %v61, 1
    %v581 = vadd.f32 %v574, %v577
    %v582 = vadd.f32 %v575, %v578
    %v583 = vmul.f32 %v581, 0.2
    %v584 = vmul.f32 %v582, 0.2
    %v585 = vmax.f32 %v581, %v583
    %v586 = vmax.f32 %v582, %v584
    %587 = vmatpush.msra.mxu0 %v223
    %588 = vmatpush.msra.mxu0 %v221
    %589 = vmatpush.msra.mxu0 %v219
    %590 = vmatpush.msra.mxu0 %v217
    %591 = vmatpush.msra.mxu0 %v215
    %592 = vmatpush.msra.mxu0 %v213
    %593 = vmatpush.msra.mxu0 %v211
    %594 = vmatpush.msra.mxu0 %v209
    %595 = vmatpush.msra.mxu0 %v207
    %596 = vmatpush.msra.mxu0 %v205
    %597 = vmatpush.msra.mxu0 %v203
    %598 = vmatpush.msra.mxu0 %v201
    %599 = vmatpush.msra.mxu0 %v199
    %600 = vmatpush.msra.mxu0 %v197
    %601 = vmatpush.msra.mxu0 %v195
    %602 = vmatpush.msra.mxu0 %v193
    %603 = vmatmul.f32.gmra.mxu0 %v585
    %v604 = vpop.f32.mrf.mxu0
    %v605 = vadd.f32 0.0, %v604
    %606 = vdwg.mxu0
    %607 = vmatpush.msra.mxu0 %v255
    %608 = vmatpush.msra.mxu0 %v253
    %609 = vmatpush.msra.mxu0 %v251
    %610 = vmatpush.msra.mxu0 %v249
    %611 = vmatpush.msra.mxu0 %v247
    %612 = vmatpush.msra.mxu0 %v245
    %613 = vmatpush.msra.mxu0 %v243
    %614 = vmatpush.msra.mxu0 %v241
    %615 = vmatpush.msra.mxu0 %v239
    %616 = vmatpush.msra.mxu0 %v237
    %617 = vmatpush.msra.mxu0 %v235
    %618 = vmatpush.msra.mxu0 %v233
    %619 = vmatpush.msra.mxu0 %v231
    %620 = vmatpush.msra.mxu0 %v229
    %621 = vmatpush.msra.mxu0 %v227
    %622 = vmatpush.msra.mxu0 %v225
    %623 = vmatmul.f32.gmra.mxu0 %v586
    %v624 = vpop.f32.mrf.mxu0
    %v625 = vadd.f32 %v605, %v624
    %626 = vdwg.mxu0
    %627 = vmatpush.msra.mxu0 %v224
    %628 = vmatpush.msra.mxu0 %v222
    %629 = vmatpush.msra.mxu0 %v220
    %630 = vmatpush.msra.mxu0 %v218
    %631 = vmatpush.msra.mxu0 %v216
    %632 = vmatpush.msra.mxu0 %v214
    %633 = vmatpush.msra.mxu0 %v212
    %634 = vmatpush.msra.mxu0 %v210
    %635 = vmatpush.msra.mxu0 %v208
    %636 = vmatpush.msra.mxu0 %v206
    %637 = vmatpush.msra.mxu0 %v204
    %638 = vmatpush.msra.mxu0 %v202
    %639 = vmatpush.msra.mxu0 %v200
    %640 = vmatpush.msra.mxu0 %v198
    %641 = vmatpush.msra.mxu0 %v196
    %642 = vmatpush.msra.mxu0 %v194
    %643 = vmatmul.f32.gmra.mxu0 %v585
    %v644 = vpop.f32.mrf.mxu0
    %v645 = vadd.f32 0.0, %v644
    %646 = vdwg.mxu0
    %647 = vmatpush.msra.mxu0 %v256
    %648 = vmatpush.msra.mxu0 %v254
    %649 = vmatpush.msra.mxu0 %v252
    %650 = vmatpush.msra.mxu0 %v250
    %651 = vmatpush.msra.mxu0 %v248
    %652 = vmatpush.msra.mxu0 %v246
    %653 = vmatpush.msra.mxu0 %v244
    %654 = vmatpush.msra.mxu0 %v242
    %655 = vmatpush.msra.mxu0 %v240
    %656 = vmatpush.msra.mxu0 %v238
    %657 = vmatpush.msra.mxu0 %v236
    %658 = vmatpush.msra.mxu0 %v234
    %659 = vmatpush.msra.mxu0 %v232
    %660 = vmatpush.msra.mxu0 %v230
    %661 = vmatpush.msra.mxu0 %v228
    %662 = vmatpush.msra.mxu0 %v226
    %663 = vmatmul.f32.gmra.mxu0 %v586
    %v664 = vpop.f32.mrf.mxu0
    %v665 = vadd.f32 %v645, %v664
    %666 = vdwg.mxu0
    %v667 = vrot.slane %v625, 4
    %v668 = vadd.f32 %v625, %v667
    %v669 = vrot.slane %v668, 2
    %v670 = vadd.f32 %v668, %v669
    %v671 = vrot.slane %v670, 1
    %v672 = vadd.f32 %v670, %v671
    %v673 = vmul.f32 %v672, %v361
    %v674 = vsub.f32 %v625, %v673
    %v675 = vmul.f32 %v674, %v674
    %v676 = vrot.slane %v675, 4
    %v677 = vadd.f32 %v675, %v676
    %v678 = vrot.slane %v677, 2
    %v679 = vadd.f32 %v677, %v678
    %v680 = vrot.slane %v679, 1
    %v681 = vadd.f32 %v679, %v680
    %v682 = vmul.f32 %v681, %v361
    %v683 = vadd.f32 %v682, 1e-05
    %v684 = vrsqrt.pop %v683
    %v685 = vmul.f32 %v684, %v683
    %v686 = vmul.f32 %v685, %v684
    %v687 = vmul.f32 0.5, %v686
    %v688 = vsub.f32 1.5, %v687
    %v689 = vmul.f32 %v684, %v688
    %vm690 = vweird.f32 %v683
    %vm691 = vweird.f32 %v684
    %vm692 = vmor %vm690, %vm691
    %v693 = vsel %vm692, %v684, %v689
    %v694 = vmul.f32 %v62, %v693
    %v696 = vperm.slane %v694, 0
    %v698 = vmul.f32 %v674, %v696
    %v700 = vperm.slane %v63, 0
    %v702 = vadd.f32 %v698, %v700
    %703 = vst [vmem:[#allocation8] sm:$0xff] %v702
    %v705 = vperm.slane %v64, 0
    %v707 = vadd.f32 %v665, %v705
    %708 = vst [vmem:[#allocation8 + $0x8] sm:$0xff] %v707
    // Predicated region
    $region26: #{tpu_custom_call.1} parent=1 // pred_check
      _
    $region27: #{tpu_custom_call.1} parent=1 // pred_check_branch
      %710 = sbr.rel (0) target = $region29
    $region28: #{tpu_custom_call.1} parent=1 // pred_region
      %712 = vsyncadd [#allocation4], 0
      %s714 = sshll.u32 [#allocation8], 4
      %s715 = int_to_ptr.vmem [resolvable:$true] %s714
      %s716 = sshll.u32 %s3, 4
      %s717 = int_to_ptr.hbm [resolvable:$true] %s716
      %719 = dma.vmem_to_hbm [thread:$0]  %s715, 256, %s717, [#allocation4]
    $region29: #{tpu_custom_call.1} parent=1 // pred_fallthru
      _
    // Predicated region
    $region30: #{tpu_custom_call.1} parent=1 // pred_check
      _
    $region31: #{tpu_custom_call.1} parent=1 // pred_check_branch
      %721 = sbr.rel (0) target = $region33
    $region32: #{tpu_custom_call.1} parent=1 // pred_region
      %723 = dma.done [#allocation4], 256
    $region33: #{tpu_custom_call.1} parent=1 // pred_fallthru
      _
    %724 = vsyncpa [#allocation3], 1
    %725 = vsyncpa [#allocation6], 1
    %726 = vsyncpa [#allocation4], 1

</llo_original>
